<compile_context>
chip_gen: v7x
topology: tpu7x:2x2x1
jax: 0.10.0
libtpu: 0.0.40
codegen_flags: <defaults>
</compile_context>

<pallas_src>
import functools

import jax
import jax.numpy as jnp
from jax.experimental import pallas as pl
from jax.experimental.pallas import tpu as pltpu


def _conv_bn_relu_mp_kernel(x_ref, b_ref, bias_ref, o_ref, *, cout, pool):
    # x_ref:    (1, 1, tile_h + KH - 1, Wp*Cin)   bf16 row-tile (with halo rows)
    # b_ref:    (KH, Wp*Cin, W*Cout)              bf16 banded weights (BN scale folded)
    # bias_ref: (1, W*Cout)                       f32 folded BN bias, tiled over x
    # o_ref:    (1, 1, tile_h//pool, Wo*Cout)     f32 pooled output (lane-flattened)
    kh_taps = b_ref.shape[0]
    wcout = b_ref.shape[2]                      # W * Cout lanes
    th = x_ref.shape[2] - (kh_taps - 1)         # conv output rows in this tile

    # Conv: KH matmuls with K = Wp*Cin (kw and cin fused into the contraction).
    acc = jnp.zeros((th, wcout), jnp.float32)
    for kh in range(kh_taps):
        acc = acc + jnp.dot(
            x_ref[0, 0, kh:kh + th, :], b_ref[kh],
            preferred_element_type=jnp.float32,
        )

    # Max-pool over rows (static slices, f32).
    acc3 = acc.reshape(th // pool, pool, wcout)
    y = acc3[:, 0, :]
    for p in range(1, pool):
        y = jnp.maximum(y, acc3[:, p, :])

    # Folded-BN bias + ReLU on the f32 accumulator (both commute with max-pool).
    y = jnp.maximum(y + bias_ref[0][None, :], 0.0)

    # Max-pool over columns: lane index is x*Cout + co, so pool adjacent Cout-chunks.
    y3 = y.reshape(th // pool, wcout // (pool * cout), pool * cout)
    z = y3[:, :, 0:cout]
    for p in range(1, pool):
        z = jnp.maximum(z, y3[:, :, p * cout:(p + 1) * cout])

    o_ref[0, 0] = z.reshape(th // pool, wcout // pool).astype(o_ref.dtype)


def _build_banded_weights(w_hwio, w_out, wp):
    """Banded weight matrices: B[kh, (x+kw)*Cin + ci, x*Cout + co] = w_hwio[kh, kw, ci, co]."""
    kh_taps, kw_taps, cin, cout = w_hwio.shape
    eye = jnp.eye(w_out, dtype=w_hwio.dtype)                                   # (x, x)
    # core[kh, kw, xa_rel, x, ci, co] nonzero only where xa_rel == x
    core = eye[None, None, :, :, None, None] * w_hwio[:, :, None, None, :, :]
    bands = jnp.zeros((kh_taps, wp, w_out, cin, cout), w_hwio.dtype)
    for kw in range(kw_taps):
        bands = bands.at[:, kw:kw + w_out].add(core[:, kw])                    # rows x + kw
    bands = jnp.transpose(bands, (0, 1, 3, 2, 4))                              # (KH, Wp, Cin, W, Cout)
    return bands.reshape(kh_taps, wp * cin, w_out * cout)


def conv2d_block_forward(x_nchw, weight, conv_bias, gamma, beta,
                         running_mean, running_var, *,
                         shape=3, pool=2, eps=1e-5, max_rows_per_tile=8):
    """Pallas forward of Conv_2d.  x_nchw: (N, Cin, H, W) -> (N, Cout, H//pool, W//pool)."""
    n, cin, h, w = x_nchw.shape
    cout = weight.shape[0]
    assert shape % 2 == 1, "SAME padding assumes an odd conv kernel"
    assert h % pool == 0 and w % pool == 0, "H and W must be divisible by the pool size"
    pad = shape // 2
    wp = w + 2 * pad

    # Row tile: largest divisor of H that is a multiple of pool and <= max_rows_per_tile.
    # (In production this would be derived from the per-generation VMEM budget:
    #  v7x has 64 MiB physical / 32 MiB default scoped, v5e/v6e have 128 MiB.)
    tile_h = pool
    for cand in range(pool, min(h, max_rows_per_tile) + 1, pool):
        if h % cand == 0:
            tile_h = cand
    num_tiles = h // tile_h
    th2 = tile_h + 2 * pad
    ho, wo, tho = h // pool, w // pool, tile_h // pool

    # ---- parameter folding: BN scale into weights, everything MXU-side in bf16 ----
    scale = (gamma / jnp.sqrt(running_var + eps)).astype(jnp.float32)
    bias = ((conv_bias - running_mean) * scale + beta).astype(jnp.float32)
    w_fold = (weight.astype(jnp.float32) * scale[:, None, None, None])
    w_hwio = jnp.transpose(w_fold, (2, 3, 1, 0))                 # (KH, KW, Cin, Cout)
    banded = _build_banded_weights(w_hwio, w, wp).astype(jnp.bfloat16)
    bias_row = jnp.tile(bias, w).reshape(1, w * cout)            # bias_row[0, x*Cout+co] = bias[co]

    # ---- input layout: NCHW -> NHWC, pad, row tiles with halo, flatten (W, Cin) to lanes ----
    x_nhwc = jnp.transpose(x_nchw, (0, 2, 3, 1)).astype(jnp.float32)
    x_pad = jnp.pad(x_nhwc, ((0, 0), (pad, pad), (pad, pad), (0, 0)))
    tiles = [x_pad[:, t * tile_h: t * tile_h + th2] for t in range(num_tiles)]
    x_tiles = jnp.stack(tiles, axis=1).reshape(n, num_tiles, th2, wp * cin)
    x_tiles = x_tiles.astype(jnp.bfloat16)

    kernel = functools.partial(_conv_bn_relu_mp_kernel, cout=cout, pool=pool)
    out = pl.pallas_call(
        kernel,
        out_shape=jax.ShapeDtypeStruct((n, num_tiles, tho, wo * cout), jnp.float32),
        grid_spec=pltpu.PrefetchScalarGridSpec(
            num_scalar_prefetch=0,
            grid=(n, num_tiles),
            in_specs=[
                pl.BlockSpec((1, 1, th2, wp * cin), lambda b, t: (b, t, 0, 0)),
                pl.BlockSpec((shape, wp * cin, w * cout), lambda b, t: (0, 0, 0)),
                pl.BlockSpec((1, w * cout), lambda b, t: (0, 0)),
            ],
            out_specs=pl.BlockSpec((1, 1, tho, wo * cout), lambda b, t: (b, t, 0, 0)),
        ),
        compiler_params=pltpu.CompilerParams(
            dimension_semantics=("parallel", "parallel"),
            vmem_limit_bytes=32 * 1024 * 1024,
        ),
    )(x_tiles, banded, bias_row)

    # (N, T, tile_h//pool, Wo*Cout) -> (N, Ho, Wo, Cout) -> NCHW
    out_nhwc = out.reshape(n, ho, wo, cout)
    return jnp.transpose(out_nhwc, (0, 3, 1, 2))


def _reference_forward(x_nchw, weight, conv_bias, gamma, beta,
                       running_mean, running_var, *, pool=2, eps=1e-5,
                       match_bf16=True):
    """Pure-JAX reference (XLA conv). With match_bf16=True it applies the same bf16
    input/weight rounding the kernel uses, so only accumulation order differs."""
    scale = gamma / jnp.sqrt(running_var + eps)
    bias = (conv_bias - running_mean) * scale + beta
    w_fold = weight * scale[:, None, None, None]
    x = x_nchw
    if match_bf16:
        x = x.astype(jnp.bfloat16).astype(jnp.float32)
        w_fold = w_fold.astype(jnp.bfloat16).astype(jnp.float32)
    y = jax.lax.conv_general_dilated(
        x, w_fold, window_strides=(1, 1), padding="SAME",
        dimension_numbers=("NCHW", "OIHW", "NCHW"),
        precision=jax.lax.Precision.HIGHEST)
    y = y + bias[None, :, None, None]
    y = jnp.maximum(y, 0.0)
    n, c, hh, ww = y.shape
    y = y.reshape(n, c, hh // pool, pool, ww // pool, pool)
    return jnp.max(y, axis=(3, 5))


if __name__ == "__main__":
    key = jax.random.PRNGKey(0)
    k_x, k_w, k_b, k_g, k_be, k_m, k_v = jax.random.split(key, 7)

    N, CIN, COUT, H, W = 2, 4, 8, 16, 16

    x = jax.random.normal(k_x, (N, CIN, H, W), dtype=jnp.float32)

    # Deterministic synthetic parameters (shapes match nn.Conv2d / nn.BatchNorm2d).
    weight = jax.random.normal(k_w, (COUT, CIN, 3, 3), dtype=jnp.float32) * 0.1
    conv_bias = jax.random.normal(k_b, (COUT,), dtype=jnp.float32) * 0.1
    gamma = 1.0 + 0.1 * jax.random.normal(k_g, (COUT,), dtype=jnp.float32)
    beta = 0.1 * jax.random.normal(k_be, (COUT,), dtype=jnp.float32)
    running_mean = 0.1 * jax.random.normal(k_m, (COUT,), dtype=jnp.float32)
    running_var = jnp.abs(jax.random.normal(k_v, (COUT,), dtype=jnp.float32)) + 0.5

    out = conv2d_block_forward(
        x, weight, conv_bias, gamma, beta, running_mean, running_var
    )
    out = jax.block_until_ready(out)

    ref = _reference_forward(
        x, weight, conv_bias, gamma, beta, running_mean, running_var
    )
    assert out.shape == (N, COUT, H // 2, W // 2), out.shape
    assert jnp.allclose(out, ref, rtol=2e-3, atol=2e-3), \
        f"max abs err = {jnp.max(jnp.abs(out - ref))}"

    print("KERNEL_OK")
</pallas_src>

<mosaic_0001>
module attributes {stable_mosaic.version = 11 : i64} {
  func.func @_conv_bn_relu_mp_kernel(%arg0: i32, %arg1: i32, %arg2: memref<1x1x10x72xbf16, #tpu.memory_space<vmem>>, %arg3: memref<3x72x128xbf16, #tpu.memory_space<vmem>>, %arg4: memref<1x128xf32, #tpu.memory_space<vmem>>, %arg5: memref<1x1x4x64xf32, #tpu.memory_space<vmem>>) attributes {dimension_semantics = [#tpu.dimension_semantics<parallel>, #tpu.dimension_semantics<parallel>], iteration_bounds = array<i64: 2, 2>, scalar_prefetch = 0 : i64, scratch_operands = 0 : i64, tpu.core_type = #tpu.core_type<tc>, window_params = [{transform_indices = @transform_0, window_bounds = array<i64: 1, 1, 10, 72>}, {pipeline_mode = #tpu.pipeline_mode<synchronous>, transform_indices = @transform_1, window_bounds = array<i64: 3, 72, 128>}, {pipeline_mode = #tpu.pipeline_mode<synchronous>, transform_indices = @transform_2, window_bounds = array<i64: 1, 128>}, {transform_indices = @transform_3, window_bounds = array<i64: 1, 1, 4, 64>}]} {
    %cst = arith.constant 0.000000e+00 : f32
    %0 = vector.broadcast %cst : f32 to vector<8x128xf32>
    %c0 = arith.constant 0 : index
    %c0_0 = arith.constant 0 : index
    %c0_1 = arith.constant 0 : index
    %c0_2 = arith.constant 0 : index
    %1 = vector.load %arg2[%c0, %c0_0, %c0_1, %c0_2] : memref<1x1x10x72xbf16, #tpu.memory_space<vmem>>, vector<1x1x8x72xbf16>
    %2 = vector.shape_cast %1 : vector<1x1x8x72xbf16> to vector<8x72xbf16>
    %c0_3 = arith.constant 0 : index
    %c0_4 = arith.constant 0 : index
    %c0_5 = arith.constant 0 : index
    %3 = vector.load %arg3[%c0_3, %c0_4, %c0_5] : memref<3x72x128xbf16, #tpu.memory_space<vmem>>, vector<1x72x128xbf16>
    %4 = vector.shape_cast %3 : vector<1x72x128xbf16> to vector<72x128xbf16>
    %cst_6 = arith.constant dense<0.000000e+00> : vector<8x128xf32>
    %5 = tpu.matmul %2, %4, %cst_6 {dimension_numbers = #tpu.dot_dimension_numbers<[1], [0], [0], [1], [0, 0, 1, 1], [], []>} : vector<8x72xbf16>, vector<72x128xbf16>, vector<8x128xf32> -> vector<8x128xf32>
    %6 = arith.addf %0, %5 : vector<8x128xf32>
    %c0_7 = arith.constant 0 : index
    %c0_8 = arith.constant 0 : index
    %c1 = arith.constant 1 : index
    %c0_9 = arith.constant 0 : index
    %7 = vector.load %arg2[%c0_7, %c0_8, %c1, %c0_9] : memref<1x1x10x72xbf16, #tpu.memory_space<vmem>>, vector<1x1x8x72xbf16>
    %8 = vector.shape_cast %7 : vector<1x1x8x72xbf16> to vector<8x72xbf16>
    %c1_10 = arith.constant 1 : index
    %c0_11 = arith.constant 0 : index
    %c0_12 = arith.constant 0 : index
    %9 = vector.load %arg3[%c1_10, %c0_11, %c0_12] : memref<3x72x128xbf16, #tpu.memory_space<vmem>>, vector<1x72x128xbf16>
    %10 = vector.shape_cast %9 : vector<1x72x128xbf16> to vector<72x128xbf16>
    %cst_13 = arith.constant dense<0.000000e+00> : vector<8x128xf32>
    %11 = tpu.matmul %8, %10, %cst_13 {dimension_numbers = #tpu.dot_dimension_numbers<[1], [0], [0], [1], [0, 0, 1, 1], [], []>} : vector<8x72xbf16>, vector<72x128xbf16>, vector<8x128xf32> -> vector<8x128xf32>
    %12 = arith.addf %6, %11 : vector<8x128xf32>
    %c0_14 = arith.constant 0 : index
    %c0_15 = arith.constant 0 : index
    %c2 = arith.constant 2 : index
    %c0_16 = arith.constant 0 : index
    %13 = vector.load %arg2[%c0_14, %c0_15, %c2, %c0_16] : memref<1x1x10x72xbf16, #tpu.memory_space<vmem>>, vector<1x1x8x72xbf16>
    %14 = vector.shape_cast %13 : vector<1x1x8x72xbf16> to vector<8x72xbf16>
    %c2_17 = arith.constant 2 : index
    %c0_18 = arith.constant 0 : index
    %c0_19 = arith.constant 0 : index
    %15 = vector.load %arg3[%c2_17, %c0_18, %c0_19] : memref<3x72x128xbf16, #tpu.memory_space<vmem>>, vector<1x72x128xbf16>
    %16 = vector.shape_cast %15 : vector<1x72x128xbf16> to vector<72x128xbf16>
    %cst_20 = arith.constant dense<0.000000e+00> : vector<8x128xf32>
    %17 = tpu.matmul %14, %16, %cst_20 {dimension_numbers = #tpu.dot_dimension_numbers<[1], [0], [0], [1], [0, 0, 1, 1], [], []>} : vector<8x72xbf16>, vector<72x128xbf16>, vector<8x128xf32> -> vector<8x128xf32>
    %18 = arith.addf %12, %17 : vector<8x128xf32>
    %19 = vector.shape_cast %18 : vector<8x128xf32> to vector<4x2x128xf32>
    %20 = vector.extract_strided_slice %19 {offsets = [0, 0, 0], sizes = [4, 1, 128], strides = [1, 1, 1]} : vector<4x2x128xf32> to vector<4x1x128xf32>
    %21 = vector.shape_cast %20 : vector<4x1x128xf32> to vector<4x128xf32>
    %22 = vector.extract_strided_slice %19 {offsets = [0, 1, 0], sizes = [4, 1, 128], strides = [1, 1, 1]} : vector<4x2x128xf32> to vector<4x1x128xf32>
    %23 = vector.shape_cast %22 : vector<4x1x128xf32> to vector<4x128xf32>
    %24 = arith.maximumf %21, %23 : vector<4x128xf32>
    %c0_21 = arith.constant 0 : index
    %c0_22 = arith.constant 0 : index
    %25 = vector.load %arg4[%c0_21, %c0_22] : memref<1x128xf32, #tpu.memory_space<vmem>>, vector<1x128xf32>
    %26 = vector.shape_cast %25 : vector<1x128xf32> to vector<128xf32>
    %27 = vector.shape_cast %26 : vector<128xf32> to vector<1x128xf32>
    %28 = vector.broadcast %27 : vector<1x128xf32> to vector<4x128xf32>
    %29 = arith.addf %24, %28 : vector<4x128xf32>
    %cst_23 = arith.constant 0.000000e+00 : f32
    %30 = vector.broadcast %cst_23 : f32 to vector<4x128xf32>
    %31 = arith.maximumf %29, %30 : vector<4x128xf32>
    %32 = vector.shape_cast %31 : vector<4x128xf32> to vector<4x8x16xf32>
    %33 = vector.extract_strided_slice %32 {offsets = [0, 0, 0], sizes = [4, 8, 8], strides = [1, 1, 1]} : vector<4x8x16xf32> to vector<4x8x8xf32>
    %34 = vector.extract_strided_slice %32 {offsets = [0, 0, 8], sizes = [4, 8, 8], strides = [1, 1, 1]} : vector<4x8x16xf32> to vector<4x8x8xf32>
    %35 = arith.maximumf %33, %34 : vector<4x8x8xf32>
    %36 = vector.shape_cast %35 : vector<4x8x8xf32> to vector<4x64xf32>
    %c0_24 = arith.constant 0 : index
    %c0_25 = arith.constant 0 : index
    %c0_26 = arith.constant 0 : index
    %c0_27 = arith.constant 0 : index
    %37 = vector.load %arg5[%c0_24, %c0_25, %c0_26, %c0_27] : memref<1x1x4x64xf32, #tpu.memory_space<vmem>>, vector<1x1x4x64xf32>
    %38 = vector.shape_cast %37 : vector<1x1x4x64xf32> to vector<4x64xf32>
    %39 = vector.shape_cast %36 : vector<4x64xf32> to vector<1x1x4x64xf32>
    tpu.vector_store %arg5[%c0_24, %c0_25, %c0_26, %c0_27], %39 {strides = array<i32>} : memref<1x1x4x64xf32, #tpu.memory_space<vmem>>, vector<1x1x4x64xf32>,
    return
  }
  func.func @transform_0(%arg0: i32, %arg1: i32) -> (i32, i32, i32, i32) {
    %c0_i32 = arith.constant 0 : i32
    %c0_i32_0 = arith.constant 0 : i32
    %c0_i32_1 = arith.constant 0 : i32
    return %arg0, %arg1, %c0_i32, %c0_i32_0 : i32, i32, i32, i32
  }
  func.func @transform_1(%arg0: i32, %arg1: i32) -> (i32, i32, i32) {
    %c0_i32 = arith.constant 0 : i32
    %c0_i32_0 = arith.constant 0 : i32
    %c0_i32_1 = arith.constant 0 : i32
    %c0_i32_2 = arith.constant 0 : i32
    return %c0_i32, %c0_i32_0, %c0_i32_1 : i32, i32, i32
  }
  func.func @transform_2(%arg0: i32, %arg1: i32) -> (i32, i32) {
    %c0_i32 = arith.constant 0 : i32
    %c0_i32_0 = arith.constant 0 : i32
    %c0_i32_1 = arith.constant 0 : i32
    return %c0_i32, %c0_i32_0 : i32, i32
  }
  func.func @transform_3(%arg0: i32, %arg1: i32) -> (i32, i32, i32, i32) {
    %c0_i32 = arith.constant 0 : i32
    %c0_i32_0 = arith.constant 0 : i32
    %c0_i32_1 = arith.constant 0 : i32
    return %arg0, %arg1, %c0_i32, %c0_i32_0 : i32, i32, i32, i32
  }
}

</mosaic_0001>

<llo_original>
// kernel: tpu_custom_call.1
$region0: #{tpu_custom_call.1}
  #allocation0 [shape = 'u32[]', space=smem, size = 0x4, offset = 0x4, fixed_abs, tag = 'smem constant byte address 0x4 - core index']
  #allocation1 [shape = 'u32[144,128]{1,0:T(1,128)}', space=vmem, size = 0x12000, scoped, tag = 'internal scratch']
  %s0 = inlined_call_operand.vmem [shape: bf16[2,2,10,72], index: 0, kind: input, shape index: {}]
  %s1 = inlined_call_operand.hbm [shape: bf16[3,72,128], index: 1, kind: input, shape index: {}]
  %s2 = inlined_call_operand.vmem [shape: f32[1,128], index: 2, kind: input, shape index: {}]
  %s3 = inlined_call_operand.hbm [shape: f32[2,2,4,64], index: 3, kind: output, shape index: {}]
  %s4 = sld [smem:[#allocation0]]
  $region49: #{tpu_custom_call.1} parent=0
    _
  %s6 = ssub.s32 1, %s4
  %s7 = scalar_select 0, %s6, %s4
  $region1: #{tpu_custom_call.1} parent=0
    #allocation2 [shape = 'u8[55296]{0}', space=vmem, size = 0xd800, scoped, tag = 'input window, operand 1, single buffered']
    #allocation3 [shape = 's32[2]{0}', space=sflag, size = 0x8, scoped, tag = 'scoped memory for tpu_custom_call.1']
    #allocation4 [shape = 's32[2]{0}', space=sflag, size = 0x8, scoped, tag = 'scoped memory for tpu_custom_call.1']
    #allocation5 [shape = 'u8[4096]{0}', space=vmem, size = 0x1000, scoped, tag = 'output window, operand 0']
    %8 = vsyncpa [#allocation3], 0
    %9 = vsyncpa [#allocation4], 0
    %s10 = scalar_lea.sflag [#allocation4], 1
    %11 = vsyncpa %s10, 0
    loop: start=0, step=1, limit=6
    $region2: #{tpu_custom_call.1} parent=1 // loop_pre_header
      _
    $region3: #{tpu_custom_call.1} parent=1 // loop_header
      %s13 = sphi 0, %s17
      %p14 = scmp.ge.s32.totalorder %s13, 6
      %s20 = sphi 0, %s32
      %s21 = sphi 0, %s28
      %s22 = sphi 0, %s20
      %s23 = sphi 0, %s21
      %s24 = sphi 0, %s22
      %s25 = sphi 0, %s23
      %s37 = sphi 0, %s39
      %s40 = sphi 0, %s37
      %s41 = sphi 0, %s40
      %s57 = sphi 0, %s41
      %s61 = sphi 0, %s61
      %s63 = sphi 0, %s61
      %s64 = sphi 0, %s63
      %s78 = sphi 0, %s64
      %s82 = sphi 0, %s82
      %s84 = sphi 0, %s82
      %s85 = sphi 0, %s84
      %s99 = sphi 0, %s85
      %s107 = sphi 0, %s109
      %s110 = sphi 0, %s107
      %s111 = sphi 0, %s110
      %s127 = sphi 0, %s111
    $region4: #{tpu_custom_call.1} parent=1 // loop_header_branch
      %16 = sbr.rel (%p14) target = $region8
    $region5: #{tpu_custom_call.1} parent=1 // loop_body
      %s18 = ssub.s32 %s13, 1
      %s19 = ssub.s32 %s13, 2
      %s26 = sadd.s32 1, %s21
      %p27 = scmp.ge.s32.totalorder %s26, 2
      %s28 = scalar_select %p27, 0, %s26
      %s29 = sadd.s32 1, %s20
      %s30 = scalar_select %p27, %s29, %s20
      %p31 = scmp.ge.s32.totalorder %s30, 2
      %s32 = scalar_select %p31, 0, %s30
      %s33 = ssub.s32 %s20, %s32
      %s34 = ssub.s32 %s21, %s28
      %s35 = sor.u32 %s33, %s34
      %p36 = scmp.eq.s32.totalorder %s35, 0
      %s38 = sadd.s32 %s37, 1
      %s39 = scalar_select %p36, %s37, %s38
      %p42 = pneg %p36
      %p43 = scmp.eq.s32.totalorder %s13, 3
      %p44 = por %p42, %p43
      %p45 = scmp.ne.s32.totalorder %s37, %s40
      %p46 = scmp.eq.s32.totalorder %s13, 0
      %p47 = por %p45, %p46
      %p48 = scmp.ne.s32.totalorder %s37, %s40
      %p49 = scmp.eq.s32.totalorder %s18, 3
      %p50 = por %p48, %p49
      %p51 = scmp.ne.s32.totalorder %s40, %s41
      %p52 = scmp.eq.s32.totalorder %s18, 0
      %p53 = por %p51, %p52
      %p54 = scmp.ne.s32.totalorder %s40, %s41
      %p55 = scmp.eq.s32.totalorder %s19, 3
      %p56 = por %p54, %p55
      %p58 = scmp.ne.s32.totalorder %s41, %s57
      %p59 = scmp.eq.s32.totalorder %s19, 0
      %p60 = por %p58, %p59
      %s62 = sadd.s32 %s61, 1
      %p65 = scmp.eq.s32.totalorder %s13, 3
      %p66 = scmp.ne.s32.totalorder %s61, %s63
      %p67 = scmp.eq.s32.totalorder %s13, 0
      %p68 = por %p66, %p67
      %p69 = scmp.ne.s32.totalorder %s61, %s63
      %p70 = scmp.eq.s32.totalorder %s18, 3
      %p71 = por %p69, %p70
      %p72 = scmp.ne.s32.totalorder %s63, %s64
      %p73 = scmp.eq.s32.totalorder %s18, 0
      %p74 = por %p72, %p73
      %p75 = scmp.ne.s32.totalorder %s63, %s64
      %p76 = scmp.eq.s32.totalorder %s19, 3
      %p77 = por %p75, %p76
      %p79 = scmp.ne.s32.totalorder %s64, %s78
      %p80 = scmp.eq.s32.totalorder %s19, 0
      %p81 = por %p79, %p80
      %s83 = sadd.s32 %s82, 1
      %p86 = scmp.eq.s32.totalorder %s13, 3
      %p87 = scmp.ne.s32.totalorder %s82, %s84
      %p88 = scmp.eq.s32.totalorder %s13, 0
      %p89 = por %p87, %p88
      %p90 = scmp.ne.s32.totalorder %s82, %s84
      %p91 = scmp.eq.s32.totalorder %s18, 3
      %p92 = por %p90, %p91
      %p93 = scmp.ne.s32.totalorder %s84, %s85
      %p94 = scmp.eq.s32.totalorder %s18, 0
      %p95 = por %p93, %p94
      %p96 = scmp.ne.s32.totalorder %s84, %s85
      %p97 = scmp.eq.s32.totalorder %s19, 3
      %p98 = por %p96, %p97
      %p100 = scmp.ne.s32.totalorder %s85, %s99
      %p101 = scmp.eq.s32.totalorder %s19, 0
      %p102 = por %p100, %p101
      %s103 = ssub.s32 %s20, %s32
      %s104 = ssub.s32 %s21, %s28
      %s105 = sor.u32 %s103, %s104
      %p106 = scmp.eq.s32.totalorder %s105, 0
      %s108 = sadd.s32 %s107, 1
      %s109 = scalar_select %p106, %s107, %s108
      %p112 = pneg %p106
      %p113 = scmp.eq.s32.totalorder %s13, 3
      %p114 = por %p112, %p113
      %p115 = scmp.ne.s32.totalorder %s107, %s110
      %p116 = scmp.eq.s32.totalorder %s13, 0
      %p117 = por %p115, %p116
      %p118 = scmp.ne.s32.totalorder %s107, %s110
      %p119 = scmp.eq.s32.totalorder %s18, 3
      %p120 = por %p118, %p119
      %p121 = scmp.ne.s32.totalorder %s110, %s111
      %p122 = scmp.eq.s32.totalorder %s18, 0
      %p123 = por %p121, %p122
      %p124 = scmp.ne.s32.totalorder %s110, %s111
      %p125 = scmp.eq.s32.totalorder %s19, 3
      %p126 = por %p124, %p125
      %p128 = scmp.ne.s32.totalorder %s111, %s127
      %p129 = scmp.eq.s32.totalorder %s19, 0
      %p130 = por %p128, %p129
      %p131 = scmp.le.s32.totalorder 1, %s13
      %p132 = scmp.lt.s32.totalorder %s13, 5
      %p133 = pnand %p131, %p132
      %p134 = pneg %p133
      // Predicated region
      $region9: #{tpu_custom_call.1} parent=5 // pred_check
        _
      $region10: #{tpu_custom_call.1} parent=5 // pred_check_branch
        %136 = sbr.rel (%p133) target = $region12
      $region11: #{tpu_custom_call.1} parent=5 // pred_region
        %s137 = ssub.s32 %s13, 1
        // Predicated region
        $region13: #{tpu_custom_call.1} parent=11 // pred_check
          %p138 = pneg %p74
        $region14: #{tpu_custom_call.1} parent=11 // pred_check_branch
          %140 = sbr.rel (%p138) target = $region16
        $region15: #{tpu_custom_call.1} parent=11 // pred_region
          %s142 = ssub.s32 1728, 1728
          %143 = vsyncadd [#allocation3], %s142
          %s144 = sshll.u32 [#allocation2], 4
          %s145 = int_to_ptr.vmem [resolvable:$true] %s144
          %150 = dma.hbm_to_vmem [thread:$0]  %s1, 1728, %s145, [#allocation3], 64, 64, 4
        $region16: #{tpu_custom_call.1} parent=11 // pred_fallthru
          _
        // Predicated region
        $region17: #{tpu_custom_call.1} parent=11 // pred_check
          %p151 = pneg %p95
        $region18: #{tpu_custom_call.1} parent=11 // pred_check_branch
          %153 = sbr.rel (%p151) target = $region20
        $region19: #{tpu_custom_call.1} parent=11 // pred_region
          _
        $region20: #{tpu_custom_call.1} parent=11 // pred_fallthru
          _
      $region12: #{tpu_custom_call.1} parent=5 // pred_fallthru
        _
      %p154 = scmp.lt.s32.totalorder %s13, 4
      // Predicated region
      $region21: #{tpu_custom_call.1} parent=5 // pred_check
        %p155 = pneg %p154
      $region22: #{tpu_custom_call.1} parent=5 // pred_check_branch
        %157 = sbr.rel (%p155) target = $region24
      $region23: #{tpu_custom_call.1} parent=5 // pred_region
        // Predicated region
        $region25: #{tpu_custom_call.1} parent=23 // pred_check
          %p158 = pneg %p47
        $region26: #{tpu_custom_call.1} parent=23 // pred_check_branch
          %160 = sbr.rel (%p158) target = $region28
        $region27: #{tpu_custom_call.1} parent=23 // pred_region
          %p161 = scmp.lt.s32.totalorder %s20, 1
          %s162 = scalar_select %p161, %s20, 1
          %p163 = scmp.lt.s32.totalorder %s21, 1
          %s164 = scalar_select %p163, %s21, 1
          %s165 = smul.addr %s164, 2
          %s166 = smul.addr %s162, 4
          %s167 = sadd.s32 %s165, %s166
          %s168 = smul.addr %s167, 4
          %s169 = scalar_lea.vmem %s0, %s168
        $region28: #{tpu_custom_call.1} parent=23 // pred_fallthru
          _
      $region24: #{tpu_custom_call.1} parent=5 // pred_fallthru
        _
      %p170 = scmp.le.s32.totalorder 1, %s13
      %p171 = scmp.lt.s32.totalorder %s13, 5
      %p172 = pnand %p170, %p171
      %p173 = pneg %p172
      // Predicated region
      $region29: #{tpu_custom_call.1} parent=5 // pred_check
        _
      $region30: #{tpu_custom_call.1} parent=5 // pred_check_branch
        %175 = sbr.rel (%p172) target = $region32
      $region31: #{tpu_custom_call.1} parent=5 // pred_region
        %s176 = ssub.s32 %s13, 1
        // Predicated region
        $region33: #{tpu_custom_call.1} parent=31 // pred_check
          %p177 = pneg %p74
        $region34: #{tpu_custom_call.1} parent=31 // pred_check_branch
          %179 = sbr.rel (%p177) target = $region36
        $region35: #{tpu_custom_call.1} parent=31 // pred_region
          %180 = dma.done [#allocation3], 1728
        $region36: #{tpu_custom_call.1} parent=31 // pred_fallthru
          _
        %p181 = scmp.lt.s32.totalorder %s22, 1
        %s182 = scalar_select %p181, %s22, 1
        %p183 = scmp.lt.s32.totalorder %s23, 1
        %s184 = scalar_select %p183, %s23, 1
        %s185 = smul.addr %s184, 2
        %s186 = smul.addr %s182, 4
        %s187 = sadd.s32 %s185, %s186
        %s188 = smul.addr %s187, 4
        %s189 = scalar_lea.vmem %s0, %s188
        %p190 = pneg %p53
        %p191 = pneg %p50
        %p192 = pneg %p74
        %p193 = pneg %p71
        %p194 = pneg %p95
        %p195 = pneg %p92
        %p196 = pneg %p123
        %p197 = pneg %p120
        %s198 = sand.u32 %s110, 1
        %s199 = scalar_lea.sflag [#allocation4], %s198
        %s200 = sand.u32 %s110, 1
        %s201 = smul.addr %s200, 4
        %s202 = scalar_lea.vmem [#allocation5], %s201
        %p203 = scmp.lt.s32.totalorder %s22, 1
        %s204 = scalar_select %p203, %s22, 1
        %p205 = scmp.lt.s32.totalorder %s23, 1
        %s206 = scalar_select %p205, %s23, 1
        %s207 = smul.addr %s206, 2
        %s208 = smul.addr %s204, 4
        %s209 = sadd.s32 %s207, %s208
        %s210 = smul.addr %s209, 4
        %s211 = scalar_lea.vmem %s0, %s210
        %v213 = vld [vmem:[%s211] sm:$0xf]
        %v214 = vld [vmem:[#allocation2] sm:$0xf]
        %v215 = vld [vmem:[#allocation2 + $0x4] sm:$0xf]
        %v216 = vld [vmem:[#allocation2 + $0x8] sm:$0xf]
        %v217 = vld [vmem:[#allocation2 + $0xc] sm:$0xf]
        %v218 = vld [vmem:[#allocation2 + $0x10] sm:$0xf]
        %v219 = vld [vmem:[#allocation2 + $0x14] sm:$0xf]
        %v220 = vld [vmem:[#allocation2 + $0x18] sm:$0xf]
        %v221 = vld [vmem:[#allocation2 + $0x1c] sm:$0xf]
        %v222 = vld [vmem:[#allocation2 + $0x20] sm:$0xf]
        %v223 = vld [vmem:[%s211 + $0x4] sm:$0x1]
        %s224 = scalar_lea.vmem [#allocation2], 36
        %v225 = vld [vmem:[%s224] sm:$0xf]
        %v226 = vld [vmem:[%s224 + $0x4] sm:$0xf]
        %v227 = vld [vmem:[%s224 + $0x8] sm:$0xf]
        %v228 = vld [vmem:[%s224 + $0xc] sm:$0xf]
        %v229 = vld [vmem:[%s224 + $0x10] sm:$0xf]
        %v230 = vld [vmem:[%s224 + $0x14] sm:$0xf]
        %v231 = vld [vmem:[%s224 + $0x18] sm:$0xf]
        %v232 = vld [vmem:[%s224 + $0x1c] sm:$0xf]
        %v233 = vld [vmem:[%s224 + $0x20] sm:$0xf]
        %v236 = vunpack.c.l.b16 %v213
        %v237 = vunpack.c.l.b16 %v223
        %v238 = vpack.c.b16 %v237, %v236
        %v240 = vshrl.u32 %v238, 16
        %v242 = vshll.u32 %v238, 16
        %v244 = vrot.slane %v242, 1
        %v245 = vor.u32 %v240, %v244
        %v255 = vunpack.c.l.b16 %v225
        %v256 = vunpack.c.l.b16 %v226
        %v257 = vunpack.c.l.b16 %v227
        %v258 = vunpack.c.l.b16 %v228
        %v259 = vunpack.c.l.b16 %v229
        %v260 = vunpack.c.l.b16 %v230
        %v261 = vunpack.c.l.b16 %v231
        %v262 = vunpack.c.l.b16 %v232
        %v263 = vunpack.c.l.b16 %v233
        %v264 = vpack.c.b16 %v256, %v255
        %v265 = vpack.c.b16 %v258, %v257
        %v266 = vpack.c.b16 %v260, %v259
        %v267 = vpack.c.b16 %v262, %v261
        %v268 = vpack.c.b16 %v263, %v263
        %vm273 = vcmask 588800
        %v275 = vsel %vm273, %v245, 0
        %vm277 = vcmask 1043456
        %v279 = vsel %vm277, %v268, 0
        %281 = vmatprep.subr.bf16.mxu0 0
        %282 = vmatpush1.bf16.msra.mxu0 %v264
        %283 = vmatprep.subr.bf16.mxu0 0
        %284 = vmatpush1.bf16.msra.mxu0 %v265
        %285 = vmatprep.subr.bf16.mxu0 0
        %286 = vmatpush1.bf16.msra.mxu0 %v266
        %287 = vmatprep.subr.bf16.mxu0 0
        %288 = vmatpush1.bf16.msra.mxu0 %v267
        %289 = vmatprep.subr.bf16.mxu0 0
        %290 = vmatpush1.bf16.msra.mxu0 %v279
        %291 = vmatprep.subr.bf16.mxu0 0
        %292 = vmatpush1.bf16.msra.mxu0 0
        %293 = vmatprep.subr.bf16.mxu0 0
        %294 = vmatpush1.bf16.msra.mxu0 0
        %295 = vmatprep.subr.bf16.mxu0 0
        %296 = vmatpush1.bf16.msra.mxu0 0
        %297 = vmatprep.subr.bf16.mxu0 0
        %298 = vmatpush1.bf16.msra.mxu0 0
        %299 = vmatprep.subr.bf16.mxu0 0
        %300 = vmatpush1.bf16.msra.mxu0 0
        %301 = vmatprep.subr.bf16.mxu0 0
        %302 = vmatpush1.bf16.msra.mxu0 0
        %303 = vmatprep.subr.bf16.mxu0 0
        %304 = vmatpush1.bf16.msra.mxu0 0
        %305 = vmatprep.subr.bf16.mxu0 0
        %306 = vmatpush1.bf16.msra.mxu0 0
        %307 = vmatprep.subr.bf16.mxu0 0
        %308 = vmatpush1.bf16.msra.mxu0 0
        %309 = vmatprep.subr.bf16.mxu0 0
        %310 = vmatpush1.bf16.msra.mxu0 0
        %311 = vmatprep.subr.bf16.mxu0 0
        %312 = vmatpush1.bf16.msra.mxu0 0
        %313 = vmatprep.mubr.bf16.mxu0 0
        %314 = vmatmul.mubr.bf16.gmra.mrb[0].mxu0 %v275
        %v315 = vpop.f32.mrb[0].mxu0
        %v316 = vadd.f32 0.0, %v315
        %v317 = vpop.f32.mrb[0].mxu0
        %v318 = vpop.f32.mrb[0].mxu0
        %v319 = vpop.f32.mrb[0].mxu0
        %320 = vdwg.mxu0
        %v330 = vunpack.c.l.b16 %v214
        %v331 = vunpack.c.l.b16 %v215
        %v332 = vunpack.c.l.b16 %v216
        %v333 = vunpack.c.l.b16 %v217
        %v334 = vunpack.c.l.b16 %v218
        %v335 = vunpack.c.l.b16 %v219
        %v336 = vunpack.c.l.b16 %v220
        %v337 = vunpack.c.l.b16 %v221
        %v338 = vunpack.c.l.b16 %v222
        %v339 = vpack.c.b16 %v331, %v330
        %v340 = vpack.c.b16 %v333, %v332
        %v341 = vpack.c.b16 %v335, %v334
        %v342 = vpack.c.b16 %v337, %v336
        %v343 = vpack.c.b16 %v338, %v338
        %v349 = vsel %vm273, %v213, 0
        %v352 = vsel %vm277, %v343, 0
        %354 = vmatprep.subr.bf16.mxu0 0
        %355 = vmatpush1.bf16.msra.mxu0 %v339
        %356 = vmatprep.subr.bf16.mxu0 0
        %357 = vmatpush1.bf16.msra.mxu0 %v340
        %358 = vmatprep.subr.bf16.mxu0 0
        %359 = vmatpush1.bf16.msra.mxu0 %v341
        %360 = vmatprep.subr.bf16.mxu0 0
        %361 = vmatpush1.bf16.msra.mxu0 %v342
        %362 = vmatprep.subr.bf16.mxu0 0
        %363 = vmatpush1.bf16.msra.mxu0 %v352
        %364 = vmatprep.subr.bf16.mxu0 0
        %365 = vmatpush1.bf16.msra.mxu0 0
        %366 = vmatprep.subr.bf16.mxu0 0
        %367 = vmatpush1.bf16.msra.mxu0 0
        %368 = vmatprep.subr.bf16.mxu0 0
        %369 = vmatpush1.bf16.msra.mxu0 0
        %370 = vmatprep.subr.bf16.mxu0 0
        %371 = vmatpush1.bf16.msra.mxu0 0
        %372 = vmatprep.subr.bf16.mxu0 0
        %373 = vmatpush1.bf16.msra.mxu0 0
        %374 = vmatprep.subr.bf16.mxu0 0
        %375 = vmatpush1.bf16.msra.mxu0 0
        %376 = vmatprep.subr.bf16.mxu0 0
        %377 = vmatpush1.bf16.msra.mxu0 0
        %378 = vmatprep.subr.bf16.mxu0 0
        %379 = vmatpush1.bf16.msra.mxu0 0
        %380 = vmatprep.subr.bf16.mxu0 0
        %381 = vmatpush1.bf16.msra.mxu0 0
        %382 = vmatprep.subr.bf16.mxu0 0
        %383 = vmatpush1.bf16.msra.mxu0 0
        %384 = vmatprep.subr.bf16.mxu0 0
        %385 = vmatpush1.bf16.msra.mxu0 0
        %386 = vmatprep.mubr.bf16.mxu0 0
        %387 = vmatmul.mubr.bf16.gmra.mrb[0].mxu0 %v349
        %v388 = vpop.f32.mrb[0].mxu0
        %v389 = vadd.f32 %v316, %v388
        %v390 = vpop.f32.mrb[0].mxu0
        %v391 = vpop.f32.mrb[0].mxu0
        %v392 = vpop.f32.mrb[0].mxu0
        %393 = vdwg.mxu0
        %v394 = vld [vmem:[%s211] sm:$0xe]
        %s395 = scalar_lea.vmem [#allocation2], 72
        %v396 = vld [vmem:[%s395] sm:$0xf]
        %v397 = vld [vmem:[%s395 + $0x4] sm:$0xf]
        %v398 = vld [vmem:[%s395 + $0x8] sm:$0xf]
        %v399 = vld [vmem:[%s395 + $0xc] sm:$0xf]
        %v400 = vld [vmem:[%s395 + $0x10] sm:$0xf]
        %v401 = vld [vmem:[%s395 + $0x14] sm:$0xf]
        %v402 = vld [vmem:[%s395 + $0x18] sm:$0xf]
        %v403 = vld [vmem:[%s395 + $0x1c] sm:$0xf]
        %v404 = vld [vmem:[%s395 + $0x20] sm:$0xf]
        %v406 = vunpack.c.l.b16 %v394
        %v407 = vpack.c.b16 %v237, %v406
        %v408 = vrot.slane %v407, 1
        %v418 = vunpack.c.l.b16 %v396
        %v419 = vunpack.c.l.b16 %v397
        %v420 = vunpack.c.l.b16 %v398
        %v421 = vunpack.c.l.b16 %v399
        %v422 = vunpack.c.l.b16 %v400
        %v423 = vunpack.c.l.b16 %v401
        %v424 = vunpack.c.l.b16 %v402
        %v425 = vunpack.c.l.b16 %v403
        %v426 = vunpack.c.l.b16 %v404
        %v427 = vpack.c.b16 %v419, %v418
        %v428 = vpack.c.b16 %v421, %v420
        %v429 = vpack.c.b16 %v423, %v422
        %v430 = vpack.c.b16 %v425, %v424
        %v431 = vpack.c.b16 %v426, %v426
        %v437 = vsel %vm273, %v408, 0
        %v440 = vsel %vm277, %v431, 0
        %442 = vmatprep.subr.bf16.mxu0 0
        %443 = vmatpush1.bf16.msra.mxu0 %v427
        %444 = vmatprep.subr.bf16.mxu0 0
        %445 = vmatpush1.bf16.msra.mxu0 %v428
        %446 = vmatprep.subr.bf16.mxu0 0
        %447 = vmatpush1.bf16.msra.mxu0 %v429
        %448 = vmatprep.subr.bf16.mxu0 0
        %449 = vmatpush1.bf16.msra.mxu0 %v430
        %450 = vmatprep.subr.bf16.mxu0 0
        %451 = vmatpush1.bf16.msra.mxu0 %v440
        %452 = vmatprep.subr.bf16.mxu0 0
        %453 = vmatpush1.bf16.msra.mxu0 0
        %454 = vmatprep.subr.bf16.mxu0 0
        %455 = vmatpush1.bf16.msra.mxu0 0
        %456 = vmatprep.subr.bf16.mxu0 0
        %457 = vmatpush1.bf16.msra.mxu0 0
        %458 = vmatprep.subr.bf16.mxu0 0
        %459 = vmatpush1.bf16.msra.mxu0 0
        %460 = vmatprep.subr.bf16.mxu0 0
        %461 = vmatpush1.bf16.msra.mxu0 0
        %462 = vmatprep.subr.bf16.mxu0 0
        %463 = vmatpush1.bf16.msra.mxu0 0
        %464 = vmatprep.subr.bf16.mxu0 0
        %465 = vmatpush1.bf16.msra.mxu0 0
        %466 = vmatprep.subr.bf16.mxu0 0
        %467 = vmatpush1.bf16.msra.mxu0 0
        %468 = vmatprep.subr.bf16.mxu0 0
        %469 = vmatpush1.bf16.msra.mxu0 0
        %470 = vmatprep.subr.bf16.mxu0 0
        %471 = vmatpush1.bf16.msra.mxu0 0
        %472 = vmatprep.subr.bf16.mxu0 0
        %473 = vmatpush1.bf16.msra.mxu0 0
        %474 = vmatprep.mubr.bf16.mxu0 0
        %475 = vmatmul.mubr.bf16.gmra.mrb[0].mxu0 %v437
        %v476 = vpop.f32.mrb[0].mxu0
        %v477 = vadd.f32 0.0, %v476
        %v478 = vpop.f32.mrb[0].mxu0
        %v479 = vpop.f32.mrb[0].mxu0
        %v480 = vpop.f32.mrb[0].mxu0
        %481 = vdwg.mxu0
        %v482 = vadd.f32 %v389, %v477
        %v484 = vcombine.high %v482, %v482
        %v486 = vunpack.c.l.s4 1983009808
        %v487 = vunpack.c.0.s8 %v486
        %v488 = vlaneseq
        %v489 = vshrl.u32 %v488, 7
        %v490 = vsub.s32 %v487, %v489
        %v491 = vrot.slane %v482, %v490
        %v493 = vunpack.c.l.s4 1983009808
        %v494 = vunpack.c.0.s8 %v493
        %v495 = vlaneseq
        %v496 = vshrl.u32 %v495, 7
        %v497 = vsub.s32 %v494, %v496
        %v498 = vrot.slane %v484, %v497
        %v499 = vcombine.high %v491, %v491
        %v500 = vcombine.high %v498, %v498
        %v505 = vrot.slane %v491, 7
        %v506 = vrot.slane %v505, 2
        %v507 = vrot.slane %v499, 7
        %v508 = vrot.slane %v507, 2
        %v509 = vrot.slane %v498, 7
        %v510 = vrot.slane %v509, 2
        %v511 = vrot.slane %v500, 7
        %v512 = vrot.slane %v511, 2
        %v517 = vmax.f32 %v491, %v506
        %v518 = vmax.f32 %v499, %v508
        %v519 = vmax.f32 %v498, %v510
        %v520 = vmax.f32 %v500, %v512
        %v521 = vld [vmem:[%s2] sm:$0x1]
        %v523 = vlaneseq
        %v524 = vshrl.u32 %v523, 7
        %v525 = vsub.s32 0, %v524
        %v526 = vrot.slane %v521, %v525
        %v528 = vunpack.c.l.s4 1983009808
        %v529 = vunpack.c.0.s8 %v528
        %v530 = vlaneseq
        %v531 = vshrl.u32 %v530, 7
        %v532 = vsub.s32 %v529, %v531
        %v533 = vrot.slane %v526, %v532
        %v534 = vcombine.high %v533, %v533
        %v535 = vrot.slane %v533, 1
        %v536 = vrot.slane %v534, 1
        %v541 = vadd.f32 %v517, %v533
        %v542 = vadd.f32 %v518, %v535
        %v543 = vadd.f32 %v519, %v534
        %v544 = vadd.f32 %v520, %v536
        %v545 = vmax.f32 %v541, 0.0
        %v546 = vmax.f32 %v542, 0.0
        %v547 = vmax.f32 %v543, 0.0
        %v548 = vmax.f32 %v544, 0.0
        %553 = vrot.lane.b32.xlu0 %v545, 112
        %v554 = vpop.permute.xlu0 %553
        %555 = vrot.lane.b32.xlu0 %v546, 112
        %v556 = vpop.permute.xlu0 %555
        %557 = vrot.lane.b32.xlu0 %v547, 112
        %v558 = vpop.permute.xlu0 %557
        %559 = vrot.lane.b32.xlu0 %v548, 112
        %v560 = vpop.permute.xlu0 %559
        %561 = vrot.lane.b32.xlu0 %v545, 96
        %v562 = vpop.permute.xlu0 %561
        %563 = vrot.lane.b32.xlu0 %v546, 96
        %v564 = vpop.permute.xlu0 %563
        %565 = vrot.lane.b32.xlu0 %v547, 96
        %v566 = vpop.permute.xlu0 %565
        %567 = vrot.lane.b32.xlu0 %v548, 96
        %v568 = vpop.permute.xlu0 %567
        %569 = vrot.lane.b32.xlu0 %v545, 80
        %v570 = vpop.permute.xlu0 %569
        %571 = vrot.lane.b32.xlu0 %v546, 80
        %v572 = vpop.permute.xlu0 %571
        %573 = vrot.lane.b32.xlu0 %v547, 80
        %v574 = vpop.permute.xlu0 %573
        %575 = vrot.lane.b32.xlu0 %v548, 80
        %v576 = vpop.permute.xlu0 %575
        %577 = vrot.lane.b32.xlu0 %v545, 64
        %v578 = vpop.permute.xlu0 %577
        %579 = vrot.lane.b32.xlu0 %v546, 64
        %v580 = vpop.permute.xlu0 %579
        %581 = vrot.lane.b32.xlu0 %v547, 64
        %v582 = vpop.permute.xlu0 %581
        %583 = vrot.lane.b32.xlu0 %v548, 64
        %v584 = vpop.permute.xlu0 %583
        %585 = vrot.lane.b32.xlu0 %v545, 48
        %v586 = vpop.permute.xlu0 %585
        %587 = vrot.lane.b32.xlu0 %v546, 48
        %v588 = vpop.permute.xlu0 %587
        %589 = vrot.lane.b32.xlu0 %v547, 48
        %v590 = vpop.permute.xlu0 %589
        %591 = vrot.lane.b32.xlu0 %v548, 48
        %v592 = vpop.permute.xlu0 %591
        %593 = vrot.lane.b32.xlu0 %v545, 32
        %v594 = vpop.permute.xlu0 %593
        %595 = vrot.lane.b32.xlu0 %v546, 32
        %v596 = vpop.permute.xlu0 %595
        %597 = vrot.lane.b32.xlu0 %v547, 32
        %v598 = vpop.permute.xlu0 %597
        %599 = vrot.lane.b32.xlu0 %v548, 32
        %v600 = vpop.permute.xlu0 %599
        %601 = vrot.lane.b32.xlu0 %v545, 16
        %v602 = vpop.permute.xlu0 %601
        %603 = vrot.lane.b32.xlu0 %v546, 16
        %v604 = vpop.permute.xlu0 %603
        %605 = vrot.lane.b32.xlu0 %v547, 16
        %v606 = vpop.permute.xlu0 %605
        %607 = vrot.lane.b32.xlu0 %v548, 16
        %v608 = vpop.permute.xlu0 %607
        %vm609 = vcmask 1044484
        %v610 = vsel %vm609, %v545, %v545
        %vm611 = vcmask 1046534
        %v612 = vsel %vm611, %v545, %v610
        %v613 = vrot.slane %v546, 7
        %vm614 = vcmask 1041409
        %v615 = vsel %vm614, %v613, %v612
        %vm616 = vcmask 1043459
        %v617 = vsel %vm616, %v613, %v615
        %vm618 = vcmask 1045509
        %v619 = vsel %vm618, %v613, %v617
        %vm620 = vcmask 1047559
        %v621 = vsel %vm620, %v613, %v619
        %v622 = vsel %vm609, %v547, %v547
        %v623 = vsel %vm611, %v547, %v622
        %v624 = vrot.slane %v548, 7
        %v625 = vsel %vm614, %v624, %v623
        %v626 = vsel %vm616, %v624, %v625
        %v627 = vsel %vm618, %v624, %v626
        %v628 = vsel %vm620, %v624, %v627
        %v629 = vsel %vm609, %v554, %v554
        %v630 = vsel %vm611, %v554, %v629
        %v631 = vrot.slane %v556, 7
        %v632 = vsel %vm614, %v631, %v630
        %v633 = vsel %vm616, %v631, %v632
        %v634 = vsel %vm618, %v631, %v633
        %v635 = vsel %vm620, %v631, %v634
        %v636 = vsel %vm609, %v558, %v558
        %v637 = vsel %vm611, %v558, %v636
        %v638 = vrot.slane %v560, 7
        %v639 = vsel %vm614, %v638, %v637
        %v640 = vsel %vm616, %v638, %v639
        %v641 = vsel %vm618, %v638, %v640
        %v642 = vsel %vm620, %v638, %v641
        %v643 = vsel %vm609, %v562, %v562
        %v644 = vsel %vm611, %v562, %v643
        %v645 = vrot.slane %v564, 7
        %v646 = vsel %vm614, %v645, %v644
        %v647 = vsel %vm616, %v645, %v646
        %v648 = vsel %vm618, %v645, %v647
        %v649 = vsel %vm620, %v645, %v648
        %v650 = vsel %vm609, %v566, %v566
        %v651 = vsel %vm611, %v566, %v650
        %v652 = vrot.slane %v568, 7
        %v653 = vsel %vm614, %v652, %v651
        %v654 = vsel %vm616, %v652, %v653
        %v655 = vsel %vm618, %v652, %v654
        %v656 = vsel %vm620, %v652, %v655
        %v657 = vsel %vm609, %v570, %v570
        %v658 = vsel %vm611, %v570, %v657
        %v659 = vrot.slane %v572, 7
        %v660 = vsel %vm614, %v659, %v658
        %v661 = vsel %vm616, %v659, %v660
        %v662 = vsel %vm618, %v659, %v661
        %v663 = vsel %vm620, %v659, %v662
        %v664 = vsel %vm609, %v574, %v574
        %v665 = vsel %vm611, %v574, %v664
        %v666 = vrot.slane %v576, 7
        %v667 = vsel %vm614, %v666, %v665
        %v668 = vsel %vm616, %v666, %v667
        %v669 = vsel %vm618, %v666, %v668
        %v670 = vsel %vm620, %v666, %v669
        %v671 = vsel %vm609, %v578, %v578
        %v672 = vsel %vm611, %v578, %v671
        %v673 = vrot.slane %v580, 7
        %v674 = vsel %vm614, %v673, %v672
        %v675 = vsel %vm616, %v673, %v674
        %v676 = vsel %vm618, %v673, %v675
        %v677 = vsel %vm620, %v673, %v676
        %v678 = vsel %vm609, %v582, %v582
        %v679 = vsel %vm611, %v582, %v678
        %v680 = vrot.slane %v584, 7
        %v681 = vsel %vm614, %v680, %v679
        %v682 = vsel %vm616, %v680, %v681
        %v683 = vsel %vm618, %v680, %v682
        %v684 = vsel %vm620, %v680, %v683
        %v685 = vsel %vm609, %v586, %v586
        %v686 = vsel %vm611, %v586, %v685
        %v687 = vrot.slane %v588, 7
        %v688 = vsel %vm614, %v687, %v686
        %v689 = vsel %vm616, %v687, %v688
        %v690 = vsel %vm618, %v687, %v689
        %v691 = vsel %vm620, %v687, %v690
        %v692 = vsel %vm609, %v590, %v590
        %v693 = vsel %vm611, %v590, %v692
        %v694 = vrot.slane %v592, 7
        %v695 = vsel %vm614, %v694, %v693
        %v696 = vsel %vm616, %v694, %v695
        %v697 = vsel %vm618, %v694, %v696
        %v698 = vsel %vm620, %v694, %v697
        %v699 = vsel %vm609, %v594, %v594
        %v700 = vsel %vm611, %v594, %v699
        %v701 = vrot.slane %v596, 7
        %v702 = vsel %vm614, %v701, %v700
        %v703 = vsel %vm616, %v701, %v702
        %v704 = vsel %vm618, %v701, %v703
        %v705 = vsel %vm620, %v701, %v704
        %v706 = vsel %vm609, %v598, %v598
        %v707 = vsel %vm611, %v598, %v706
        %v708 = vrot.slane %v600, 7
        %v709 = vsel %vm614, %v708, %v707
        %v710 = vsel %vm616, %v708, %v709
        %v711 = vsel %vm618, %v708, %v710
        %v712 = vsel %vm620, %v708, %v711
        %v713 = vsel %vm609, %v602, %v602
        %v714 = vsel %vm611, %v602, %v713
        %v715 = vrot.slane %v604, 7
        %v716 = vsel %vm614, %v715, %v714
        %v717 = vsel %vm616, %v715, %v716
        %v718 = vsel %vm618, %v715, %v717
        %v719 = vsel %vm620, %v715, %v718
        %v720 = vsel %vm609, %v606, %v606
        %v721 = vsel %vm611, %v606, %v720
        %v722 = vrot.slane %v608, 7
        %v723 = vsel %vm614, %v722, %v721
        %v724 = vsel %vm616, %v722, %v723
        %v725 = vsel %vm618, %v722, %v724
        %v726 = vsel %vm620, %v722, %v725
        %v743 = vcombine.low %v621, %v635
        %v745 = vunpack.c.l.s4 1934713408
        %v746 = vunpack.c.0.s8 %v745
        %v747 = vlaneseq
        %v748 = vshrl.u32 %v747, 7
        %v749 = vsub.s32 %v746, %v748
        %v750 = vrot.slane %v743, %v749
        %v751 = vcombine.high %v750, 0.0
        %v752 = vcombine.low %v649, %v663
        %v754 = vunpack.c.l.s4 1934713408
        %v755 = vunpack.c.0.s8 %v754
        %v756 = vlaneseq
        %v757 = vshrl.u32 %v756, 7
        %v758 = vsub.s32 %v755, %v757
        %v759 = vrot.slane %v752, %v758
        %v760 = vcombine.high %v759, 0.0
        %v761 = vcombine.low %v677, %v691
        %v763 = vunpack.c.l.s4 1934713408
        %v764 = vunpack.c.0.s8 %v763
        %v765 = vlaneseq
        %v766 = vshrl.u32 %v765, 7
        %v767 = vsub.s32 %v764, %v766
        %v768 = vrot.slane %v761, %v767
        %v769 = vcombine.high %v768, 0.0
        %v770 = vcombine.low %v705, %v719
        %v772 = vunpack.c.l.s4 1934713408
        %v773 = vunpack.c.0.s8 %v772
        %v774 = vlaneseq
        %v775 = vshrl.u32 %v774, 7
        %v776 = vsub.s32 %v773, %v775
        %v777 = vrot.slane %v770, %v776
        %v778 = vcombine.high %v777, 0.0
        %v779 = vcombine.low %v628, %v642
        %v781 = vunpack.c.l.s4 1934713408
        %v782 = vunpack.c.0.s8 %v781
        %v783 = vlaneseq
        %v784 = vshrl.u32 %v783, 7
        %v785 = vsub.s32 %v782, %v784
        %v786 = vrot.slane %v779, %v785
        %v787 = vcombine.high %v786, 0.0
        %v788 = vcombine.low %v656, %v670
        %v790 = vunpack.c.l.s4 1934713408
        %v791 = vunpack.c.0.s8 %v790
        %v792 = vlaneseq
        %v793 = vshrl.u32 %v792, 7
        %v794 = vsub.s32 %v791, %v793
        %v795 = vrot.slane %v788, %v794
        %v796 = vcombine.high %v795, 0.0
        %v797 = vcombine.low %v684, %v698
        %v799 = vunpack.c.l.s4 1934713408
        %v800 = vunpack.c.0.s8 %v799
        %v801 = vlaneseq
        %v802 = vshrl.u32 %v801, 7
        %v803 = vsub.s32 %v800, %v802
        %v804 = vrot.slane %v797, %v803
        %v805 = vcombine.high %v804, 0.0
        %v806 = vcombine.low %v712, %v726
        %v808 = vunpack.c.l.s4 1934713408
        %v809 = vunpack.c.0.s8 %v808
        %v810 = vlaneseq
        %v811 = vshrl.u32 %v810, 7
        %v812 = vsub.s32 %v809, %v811
        %v813 = vrot.slane %v806, %v812
        %v814 = vcombine.high %v813, 0.0
        %831 = vrot.lane.b32.xlu0 %v750, 120
        %v832 = vpop.permute.xlu0 %831
        %833 = vrot.lane.b32.xlu0 %v759, 120
        %v834 = vpop.permute.xlu0 %833
        %835 = vrot.lane.b32.xlu0 %v768, 120
        %v836 = vpop.permute.xlu0 %835
        %837 = vrot.lane.b32.xlu0 %v777, 120
        %v838 = vpop.permute.xlu0 %837
        %839 = vrot.lane.b32.xlu0 %v751, 120
        %v840 = vpop.permute.xlu0 %839
        %841 = vrot.lane.b32.xlu0 %v760, 120
        %v842 = vpop.permute.xlu0 %841
        %843 = vrot.lane.b32.xlu0 %v769, 120
        %v844 = vpop.permute.xlu0 %843
        %845 = vrot.lane.b32.xlu0 %v778, 120
        %v846 = vpop.permute.xlu0 %845
        %847 = vrot.lane.b32.xlu0 %v786, 120
        %v848 = vpop.permute.xlu0 %847
        %849 = vrot.lane.b32.xlu0 %v795, 120
        %v850 = vpop.permute.xlu0 %849
        %851 = vrot.lane.b32.xlu0 %v804, 120
        %v852 = vpop.permute.xlu0 %851
        %853 = vrot.lane.b32.xlu0 %v813, 120
        %v854 = vpop.permute.xlu0 %853
        %855 = vrot.lane.b32.xlu0 %v787, 120
        %v856 = vpop.permute.xlu0 %855
        %857 = vrot.lane.b32.xlu0 %v796, 120
        %v858 = vpop.permute.xlu0 %857
        %859 = vrot.lane.b32.xlu0 %v805, 120
        %v860 = vpop.permute.xlu0 %859
        %861 = vrot.lane.b32.xlu0 %v814, 120
        %v862 = vpop.permute.xlu0 %861
        %v879 = vmax.f32 %v750, %v832
        %v880 = vmax.f32 %v759, %v834
        %v881 = vmax.f32 %v768, %v836
        %v882 = vmax.f32 %v777, %v838
        %v883 = vmax.f32 %v751, %v840
        %v884 = vmax.f32 %v760, %v842
        %v885 = vmax.f32 %v769, %v844
        %v886 = vmax.f32 %v778, %v846
        %v887 = vmax.f32 %v786, %v848
        %v888 = vmax.f32 %v795, %v850
        %v889 = vmax.f32 %v804, %v852
        %v890 = vmax.f32 %v813, %v854
        %v891 = vmax.f32 %v787, %v856
        %v892 = vmax.f32 %v796, %v858
        %v893 = vmax.f32 %v805, %v860
        %v894 = vmax.f32 %v814, %v862
        %v895 = vcombine.low %v879, %v883
        %v897 = vunpack.c.l.s4 1934713408
        %v898 = vunpack.c.0.s8 %v897
        %v899 = vlaneseq
        %v900 = vshrl.u32 %v899, 7
        %v901 = vsub.s32 %v898, %v900
        %v902 = vrot.slane %v895, %v901
        %v903 = vcombine.high %v902, 0.0
        %v904 = vcombine.low %v887, %v891
        %v906 = vunpack.c.l.s4 1934713408
        %v907 = vunpack.c.0.s8 %v906
        %v908 = vlaneseq
        %v909 = vshrl.u32 %v908, 7
        %v910 = vsub.s32 %v907, %v909
        %v911 = vrot.slane %v904, %v910
        %v912 = vcombine.high %v911, 0.0
        %v913 = vcombine.low %v880, %v884
        %v915 = vunpack.c.l.s4 1934713408
        %v916 = vunpack.c.0.s8 %v915
        %v917 = vlaneseq
        %v918 = vshrl.u32 %v917, 7
        %v919 = vsub.s32 %v916, %v918
        %v920 = vrot.slane %v913, %v919
        %v921 = vcombine.high %v920, 0.0
        %v922 = vcombine.low %v888, %v892
        %v924 = vunpack.c.l.s4 1934713408
        %v925 = vunpack.c.0.s8 %v924
        %v926 = vlaneseq
        %v927 = vshrl.u32 %v926, 7
        %v928 = vsub.s32 %v925, %v927
        %v929 = vrot.slane %v922, %v928
        %v930 = vcombine.high %v929, 0.0
        %v931 = vcombine.low %v881, %v885
        %v933 = vunpack.c.l.s4 1934713408
        %v934 = vunpack.c.0.s8 %v933
        %v935 = vlaneseq
        %v936 = vshrl.u32 %v935, 7
        %v937 = vsub.s32 %v934, %v936
        %v938 = vrot.slane %v931, %v937
        %v939 = vcombine.high %v938, 0.0
        %v940 = vcombine.low %v889, %v893
        %v942 = vunpack.c.l.s4 1934713408
        %v943 = vunpack.c.0.s8 %v942
        %v944 = vlaneseq
        %v945 = vshrl.u32 %v944, 7
        %v946 = vsub.s32 %v943, %v945
        %v947 = vrot.slane %v940, %v946
        %v948 = vcombine.high %v947, 0.0
        %v949 = vcombine.low %v882, %v886
        %v951 = vunpack.c.l.s4 1934713408
        %v952 = vunpack.c.0.s8 %v951
        %v953 = vlaneseq
        %v954 = vshrl.u32 %v953, 7
        %v955 = vsub.s32 %v952, %v954
        %v956 = vrot.slane %v949, %v955
        %v957 = vcombine.high %v956, 0.0
        %v958 = vcombine.low %v890, %v894
        %v960 = vunpack.c.l.s4 1934713408
        %v961 = vunpack.c.0.s8 %v960
        %v962 = vlaneseq
        %v963 = vshrl.u32 %v962, 7
        %v964 = vsub.s32 %v961, %v963
        %v965 = vrot.slane %v958, %v964
        %v966 = vcombine.high %v965, 0.0
        %v969 = vcombine.low %v902, %v911
        %v971 = vunpack.c.l.s4 1983009808
        %v972 = vunpack.c.0.s8 %v971
        %v973 = vlaneseq
        %v974 = vshrl.u32 %v973, 7
        %v975 = vsub.s32 %v972, %v974
        %v976 = vrot.slane %v969, %v975
        %v980 = vcombine.low %v903, %v912
        %v982 = vunpack.c.l.s4 1983009808
        %v983 = vunpack.c.0.s8 %v982
        %v984 = vlaneseq
        %v985 = vshrl.u32 %v984, 7
        %v986 = vsub.s32 %v983, %v985
        %v987 = vrot.slane %v980, %v986
        %988 = vrot.lane.b32.xlu0 %v987, 8
        %v989 = vpop.permute.xlu0 %988
        %v993 = vcombine.low %v920, %v929
        %v995 = vunpack.c.l.s4 1983009808
        %v996 = vunpack.c.0.s8 %v995
        %v997 = vlaneseq
        %v998 = vshrl.u32 %v997, 7
        %v999 = vsub.s32 %v996, %v998
        %v1000 = vrot.slane %v993, %v999
        %1001 = vrot.lane.b32.xlu0 %v1000, 16
        %v1002 = vpop.permute.xlu0 %1001
        %v1006 = vcombine.low %v921, %v930
        %v1008 = vunpack.c.l.s4 1983009808
        %v1009 = vunpack.c.0.s8 %v1008
        %v1010 = vlaneseq
        %v1011 = vshrl.u32 %v1010, 7
        %v1012 = vsub.s32 %v1009, %v1011
        %v1013 = vrot.slane %v1006, %v1012
        %1014 = vrot.lane.b32.xlu0 %v1013, 24
        %v1015 = vpop.permute.xlu0 %1014
        %v1019 = vcombine.low %v938, %v947
        %v1021 = vunpack.c.l.s4 1983009808
        %v1022 = vunpack.c.0.s8 %v1021
        %v1023 = vlaneseq
        %v1024 = vshrl.u32 %v1023, 7
        %v1025 = vsub.s32 %v1022, %v1024
        %v1026 = vrot.slane %v1019, %v1025
        %1027 = vrot.lane.b32.xlu0 %v1026, 32
        %v1028 = vpop.permute.xlu0 %1027
        %v1032 = vcombine.low %v939, %v948
        %v1034 = vunpack.c.l.s4 1983009808
        %v1035 = vunpack.c.0.s8 %v1034
        %v1036 = vlaneseq
        %v1037 = vshrl.u32 %v1036, 7
        %v1038 = vsub.s32 %v1035, %v1037
        %v1039 = vrot.slane %v1032, %v1038
        %1040 = vrot.lane.b32.xlu0 %v1039, 40
        %v1041 = vpop.permute.xlu0 %1040
        %v1045 = vcombine.low %v956, %v965
        %v1047 = vunpack.c.l.s4 1983009808
        %v1048 = vunpack.c.0.s8 %v1047
        %v1049 = vlaneseq
        %v1050 = vshrl.u32 %v1049, 7
        %v1051 = vsub.s32 %v1048, %v1050
        %v1052 = vrot.slane %v1045, %v1051
        %1053 = vrot.lane.b32.xlu0 %v1052, 48
        %v1054 = vpop.permute.xlu0 %1053
        %v1058 = vcombine.low %v957, %v966
        %v1060 = vunpack.c.l.s4 1983009808
        %v1061 = vunpack.c.0.s8 %v1060
        %v1062 = vlaneseq
        %v1063 = vshrl.u32 %v1062, 7
        %v1064 = vsub.s32 %v1061, %v1063
        %v1065 = vrot.slane %v1058, %v1064
        %1066 = vrot.lane.b32.xlu0 %v1065, 56
        %v1067 = vpop.permute.xlu0 %1066
        %vm1069 = vcmask 64512
        %v1070 = vsel %vm1069, %v976, %v989
        %vm1071 = vcmask 130048
        %v1072 = vsel %vm1071, %v1070, %v1002
        %vm1073 = vcmask 195584
        %v1074 = vsel %vm1073, %v1072, %v1015
        %vm1075 = vcmask 261120
        %v1076 = vsel %vm1075, %v1074, %v1028
        %vm1077 = vcmask 326656
        %v1078 = vsel %vm1077, %v1076, %v1041
        %vm1079 = vcmask 392192
        %v1080 = vsel %vm1079, %v1078, %v1054
        %vm1081 = vcmask 457728
        %v1082 = vsel %vm1081, %v1080, %v1067
        %vm1083 = vcmask 519168
        %1084 = vst.msk [vmem:[%s202] sm:$0xf] %vm1083, %v1082
        %s1085 = sand.u32 %s110, 1
        %s1086 = scalar_lea.sflag [#allocation4], %s1085
        %s1087 = sand.u32 %s110, 1
        %s1088 = smul.addr %s1087, 4
        %s1089 = scalar_lea.vmem [#allocation5], %s1088
        // Predicated region
        $region37: #{tpu_custom_call.1} parent=31 // pred_check
          %p1090 = pneg %p120
        $region38: #{tpu_custom_call.1} parent=31 // pred_check_branch
          %1092 = sbr.rel (%p1090) target = $region40
        $region39: #{tpu_custom_call.1} parent=31 // pred_region
          %s1094 = ssub.s32 64, 64
          %1095 = vsyncadd %s1086, %s1094
          %s1096 = smul.addr %s22, 2
          %s1097 = sadd.s32 %s23, %s1096
          %s1098 = smul.addr %s1097, 64
          %s1099 = scalar_lea.hbm %s3, %s1098
          %s1101 = sshll.u32 %s1089, 4
          %s1102 = int_to_ptr.vmem [resolvable:$true] %s1101
          %1104 = dma.vmem_to_hbm [thread:$0]  %s1102, 64, %s1099, %s1086
        $region40: #{tpu_custom_call.1} parent=31 // pred_fallthru
          _
      $region32: #{tpu_custom_call.1} parent=5 // pred_fallthru
        _
      %p1105 = scmp.le.s32.totalorder 2, %s13
      // Predicated region
      $region41: #{tpu_custom_call.1} parent=5 // pred_check
        %p1106 = pneg %p1105
      $region42: #{tpu_custom_call.1} parent=5 // pred_check_branch
        %1108 = sbr.rel (%p1106) target = $region44
      $region43: #{tpu_custom_call.1} parent=5 // pred_region
        %s1109 = ssub.s32 %s13, 2
        // Predicated region
        $region45: #{tpu_custom_call.1} parent=43 // pred_check
          %p1110 = pneg %p126
        $region46: #{tpu_custom_call.1} parent=43 // pred_check_branch
          %1112 = sbr.rel (%p1110) target = $region48
        $region47: #{tpu_custom_call.1} parent=43 // pred_region
          %s1113 = sand.u32 %s111, 1
          %s1114 = scalar_lea.sflag [#allocation4], %s1113
          %s1115 = sand.u32 %s111, 1
          %s1116 = smul.addr %s1115, 4
          %s1117 = scalar_lea.vmem [#allocation5], %s1116
          %1118 = dma.done %s1114, 64
        $region48: #{tpu_custom_call.1} parent=43 // pred_fallthru
          _
      $region44: #{tpu_custom_call.1} parent=5 // pred_fallthru
        _
    $region6: #{tpu_custom_call.1} parent=1 // loop_footer
      %s17 = sadd.s32 1, %s13
    $region7: #{tpu_custom_call.1} parent=1 // loop_footer_branch
      %12 = sbr.rel target = $region3
    $region8: #{tpu_custom_call.1} parent=1 // loop_exit
      _
    %1119 = vsyncpa [#allocation3], 1
    %s1120 = scalar_lea.sflag [#allocation3], 1
    %1121 = vsyncpa %s1120, 1
    %1122 = vsyncpa [#allocation4], 1
    %s1123 = scalar_lea.sflag [#allocation4], 1
    %1124 = vsyncpa %s1123, 1

</llo_original>
